<compile_context>
chip_gen: v6e
topology: v6e:2x2x1
jax: 0.10.0
libtpu: 0.0.40
codegen_flags: <defaults>
</compile_context>

<pallas_src>
import functools

import jax
import jax.numpy as jnp
from jax.experimental import pallas as pl
from jax.experimental.pallas import tpu as pltpu

EPS = 1e-06


def _vn_leaky_relu_kernel(x_ref, w_ref, o_ref, *, negative_slope):
    # x_ref: (C, D, TN) activations (any float dtype; compute in f32)
    # w_ref: (c_out, C) f32 direction-map weight (resident across grid steps)
    # o_ref: (C, D, TN) output tile
    d_dim = x_ref.shape[1]
    w = w_ref[...]  # already f32 (cast hoisted to the wrapper)

    # Lane-dense per-component slabs: all elementwise work below runs on
    # dense (C, TN) vregs (no 3->8 sublane padding on the compute path).
    xs = [x_ref[:, k, :].astype(jnp.float32) for k in range(d_dim)]

    # d = map_to_dir(x.transpose(1,-1)).transpose(1,-1)
    #   == per-component channel-mixing matmuls on the MXU.
    ds = [jnp.dot(w, xk, preferred_element_type=jnp.float32) for xk in xs]

    # Reductions over the vector axis as 3-term FMAs (exact f32, pure VPU).
    dotprod = sum(xk * dk for xk, dk in zip(xs, ds))   # (C, TN) (bcast if c_out==1)
    d_norm_sq = sum(dk * dk for dk in ds)              # (c_out, TN)

    # out = x - (1 - ns) * coef * d,  coef = where(dot >= 0, 0, dot / (|d|^2 + eps))
    # (exact reciprocal keeps bit-faithfulness; approx=True is available if not needed)
    inv = pl.reciprocal(d_norm_sq + EPS, approx=False)
    coef = jnp.where(dotprod >= 0.0, 0.0, dotprod * inv)
    scale = 1.0 - negative_slope

    for k in range(d_dim):
        o_ref[:, k, :] = (xs[k] - scale * (coef * ds[k])).astype(o_ref.dtype)


def _pick_n_tile(n, target):
    """Largest multiple-of-128 divisor of n that is <= target (else n itself)."""
    if n % 128 != 0:
        return n  # full-width block on the last axis: always a legal BlockSpec
    tn = max(128, min(n, (target // 128) * 128))
    while n % tn != 0:
        tn -= 128
    return tn


def vn_leaky_relu(x, weight, negative_slope=0.2, *, n_tile=512):
    """VNLeakyReLU forward.

    x: [B, C, D, N] float (f32 or bf16); weight: [c_out, C] with c_out in {C, 1}.
    """
    B, C, D, N = x.shape
    c_out, c_in = weight.shape
    assert c_in == C and c_out in (C, 1), "weight must be (C, C) or (1, C)"

    w = weight.astype(jnp.float32)          # hoisted cast; stays VMEM-resident
    tn = _pick_n_tile(N, n_tile)            # lane-dense (multiple of 128) N tiles
    grid = (B, pl.cdiv(N, tn))

    kernel = functools.partial(
        _vn_leaky_relu_kernel, negative_slope=float(negative_slope)
    )

    return pl.pallas_call(
        kernel,
        out_shape=jax.ShapeDtypeStruct((B, C, D, N), x.dtype),
        grid_spec=pltpu.PrefetchScalarGridSpec(
            num_scalar_prefetch=0,
            grid=grid,
            in_specs=[
                # batch squeezed; N tiled -> kernel sees (C, D, TN)
                pl.BlockSpec((None, C, D, tn), lambda b, j: (b, 0, 0, j)),
                # small weight, constant index_map -> fetched once, kept resident
                pl.BlockSpec((c_out, C), lambda b, j: (0, 0)),
            ],
            out_specs=pl.BlockSpec((None, C, D, tn), lambda b, j: (b, 0, 0, j)),
        ),
        compiler_params=pltpu.CompilerParams(
            dimension_semantics=("parallel", "parallel"),
            # Explicit scoped-VMEM budget; 48 MiB leaves headroom on v7x (64 MiB
            # physical) and is well within v5e/v6e (128 MiB).
            vmem_limit_bytes=48 * 1024 * 1024,
        ),
    )(x, w)


def vn_leaky_relu_ref(x, weight, negative_slope=0.2):
    """Pure-JAX reference mirroring the PyTorch forward exactly."""
    d = jnp.einsum("oc,bcdn->bodn", weight, x)
    dotprod = jnp.sum(x * d, axis=2, keepdims=True)
    mask = (dotprod >= 0).astype(x.dtype)
    d_norm_sq = jnp.sum(d * d, axis=2, keepdims=True)
    return negative_slope * x + (1 - negative_slope) * (
        mask * x + (1 - mask) * (x - dotprod / (d_norm_sq + EPS) * d)
    )


if __name__ == "__main__":
    B, C, D, N = 2, 8, 3, 256
    negative_slope = 0.2

    key = jax.random.PRNGKey(0)
    kx, kw1, kw2 = jax.random.split(key, 3)

    x = jax.random.normal(kx, (B, C, D, N), dtype=jnp.float32)
    # nn.Linear default init: U(-1/sqrt(in_features), 1/sqrt(in_features))
    bound = 1.0 / (C ** 0.5)
    w_full = jax.random.uniform(kw1, (C, C), jnp.float32, -bound, bound)   # share_nonlinearity=False
    w_shared = jax.random.uniform(kw2, (1, C), jnp.float32, -bound, bound)  # share_nonlinearity=True

    # n_tile=128 -> grid (2, 2): exercises the tiled, multi-step pipeline.
    out = jax.block_until_ready(vn_leaky_relu(x, w_full, negative_slope, n_tile=128))
    ref = vn_leaky_relu_ref(x, w_full, negative_slope)
    assert out.shape == (B, C, D, N)
    assert jnp.allclose(out, ref, atol=1e-5, rtol=1e-5), "mismatch vs reference (per-channel)"

    out_s = jax.block_until_ready(vn_leaky_relu(x, w_shared, negative_slope, n_tile=128))
    ref_s = vn_leaky_relu_ref(x, w_shared, negative_slope)
    assert jnp.allclose(out_s, ref_s, atol=1e-5, rtol=1e-5), "mismatch vs reference (shared)"

    print("KERNEL_OK")
</pallas_src>

<mosaic_0001>
module attributes {stable_mosaic.version = 11 : i64} {
  func.func @_vn_leaky_relu_kernel(%arg0: i32, %arg1: i32, %arg2: memref<1x8x3x128xf32, #tpu.memory_space<vmem>>, %arg3: memref<8x8xf32, #tpu.memory_space<vmem>>, %arg4: memref<1x8x3x128xf32, #tpu.memory_space<vmem>>) attributes {dimension_semantics = [#tpu.dimension_semantics<parallel>, #tpu.dimension_semantics<parallel>], iteration_bounds = array<i64: 2, 2>, scalar_prefetch = 0 : i64, scratch_operands = 0 : i64, tpu.core_type = #tpu.core_type<tc>, window_params = [{transform_indices = @transform_0, window_bounds = array<i64: 1, 8, 3, 128>}, {pipeline_mode = #tpu.pipeline_mode<synchronous>, transform_indices = @transform_1, window_bounds = array<i64: 8, 8>}, {transform_indices = @transform_2, window_bounds = array<i64: 1, 8, 3, 128>}]} {
    %c0 = arith.constant 0 : index
    %c0_0 = arith.constant 0 : index
    %0 = vector.load %arg3[%c0, %c0_0] : memref<8x8xf32, #tpu.memory_space<vmem>>, vector<8x8xf32>
    %c0_1 = arith.constant 0 : index
    %c0_2 = arith.constant 0 : index
    %c0_3 = arith.constant 0 : index
    %c0_4 = arith.constant 0 : index
    %1 = vector.load %arg2[%c0_1, %c0_2, %c0_3, %c0_4] : memref<1x8x3x128xf32, #tpu.memory_space<vmem>>, vector<1x8x1x128xf32>
    %2 = vector.shape_cast %1 : vector<1x8x1x128xf32> to vector<8x128xf32>
    %c0_5 = arith.constant 0 : index
    %c0_6 = arith.constant 0 : index
    %c1 = arith.constant 1 : index
    %c0_7 = arith.constant 0 : index
    %3 = vector.load %arg2[%c0_5, %c0_6, %c1, %c0_7] : memref<1x8x3x128xf32, #tpu.memory_space<vmem>>, vector<1x8x1x128xf32>
    %4 = vector.shape_cast %3 : vector<1x8x1x128xf32> to vector<8x128xf32>
    %c0_8 = arith.constant 0 : index
    %c0_9 = arith.constant 0 : index
    %c2 = arith.constant 2 : index
    %c0_10 = arith.constant 0 : index
    %5 = vector.load %arg2[%c0_8, %c0_9, %c2, %c0_10] : memref<1x8x3x128xf32, #tpu.memory_space<vmem>>, vector<1x8x1x128xf32>
    %6 = vector.shape_cast %5 : vector<1x8x1x128xf32> to vector<8x128xf32>
    %cst = arith.constant dense<0.000000e+00> : vector<8x128xf32>
    %7 = tpu.matmul %0, %2, %cst {dimension_numbers = #tpu.dot_dimension_numbers<[1], [0], [0], [1], [0, 0, 1, 1], [], []>} : vector<8x8xf32>, vector<8x128xf32>, vector<8x128xf32> -> vector<8x128xf32>
    %cst_11 = arith.constant dense<0.000000e+00> : vector<8x128xf32>
    %8 = tpu.matmul %0, %4, %cst_11 {dimension_numbers = #tpu.dot_dimension_numbers<[1], [0], [0], [1], [0, 0, 1, 1], [], []>} : vector<8x8xf32>, vector<8x128xf32>, vector<8x128xf32> -> vector<8x128xf32>
    %cst_12 = arith.constant dense<0.000000e+00> : vector<8x128xf32>
    %9 = tpu.matmul %0, %6, %cst_12 {dimension_numbers = #tpu.dot_dimension_numbers<[1], [0], [0], [1], [0, 0, 1, 1], [], []>} : vector<8x8xf32>, vector<8x128xf32>, vector<8x128xf32> -> vector<8x128xf32>
    %10 = arith.mulf %2, %7 : vector<8x128xf32>
    %cst_13 = arith.constant 0.000000e+00 : f32
    %11 = vector.broadcast %cst_13 : f32 to vector<8x128xf32>
    %12 = arith.addf %11, %10 : vector<8x128xf32>
    %13 = arith.mulf %4, %8 : vector<8x128xf32>
    %14 = arith.addf %12, %13 : vector<8x128xf32>
    %15 = arith.mulf %6, %9 : vector<8x128xf32>
    %16 = arith.addf %14, %15 : vector<8x128xf32>
    %17 = arith.mulf %7, %7 : vector<8x128xf32>
    %cst_14 = arith.constant 0.000000e+00 : f32
    %18 = vector.broadcast %cst_14 : f32 to vector<8x128xf32>
    %19 = arith.addf %18, %17 : vector<8x128xf32>
    %20 = arith.mulf %8, %8 : vector<8x128xf32>
    %21 = arith.addf %19, %20 : vector<8x128xf32>
    %22 = arith.mulf %9, %9 : vector<8x128xf32>
    %23 = arith.addf %21, %22 : vector<8x128xf32>
    %cst_15 = arith.constant 9.99999997E-7 : f32
    %24 = vector.broadcast %cst_15 : f32 to vector<8x128xf32>
    %25 = arith.addf %23, %24 : vector<8x128xf32>
    %26 = tpu.reciprocal %25 : vector<8x128xf32> -> vector<8x128xf32>
    %cst_16 = arith.constant 0.000000e+00 : f32
    %27 = vector.broadcast %cst_16 : f32 to vector<8x128xf32>
    %28 = arith.cmpf oge, %16, %27 : vector<8x128xf32>
    %29 = arith.mulf %16, %26 : vector<8x128xf32>
    %cst_17 = arith.constant 0.000000e+00 : f32
    %30 = vector.broadcast %cst_17 : f32 to vector<8x128xf32>
    %31 = arith.select %28, %30, %29 : vector<8x128xi1>, vector<8x128xf32>
    %32 = arith.mulf %31, %7 : vector<8x128xf32>
    %cst_18 = arith.constant 8.000000e-01 : f32
    %33 = vector.broadcast %cst_18 : f32 to vector<8x128xf32>
    %34 = arith.mulf %33, %32 : vector<8x128xf32>
    %35 = arith.subf %2, %34 : vector<8x128xf32>
    %c0_19 = arith.constant 0 : index
    %c0_20 = arith.constant 0 : index
    %c0_21 = arith.constant 0 : index
    %c0_22 = arith.constant 0 : index
    %36 = vector.load %arg4[%c0_19, %c0_20, %c0_21, %c0_22] : memref<1x8x3x128xf32, #tpu.memory_space<vmem>>, vector<1x8x1x128xf32>
    %37 = vector.shape_cast %36 : vector<1x8x1x128xf32> to vector<8x128xf32>
    %38 = vector.shape_cast %35 : vector<8x128xf32> to vector<1x8x1x128xf32>
    tpu.vector_store %arg4[%c0_19, %c0_20, %c0_21, %c0_22], %38 {strides = array<i32>} : memref<1x8x3x128xf32, #tpu.memory_space<vmem>>, vector<1x8x1x128xf32>,
    %39 = arith.mulf %31, %8 : vector<8x128xf32>
    %cst_23 = arith.constant 8.000000e-01 : f32
    %40 = vector.broadcast %cst_23 : f32 to vector<8x128xf32>
    %41 = arith.mulf %40, %39 : vector<8x128xf32>
    %42 = arith.subf %4, %41 : vector<8x128xf32>
    %c0_24 = arith.constant 0 : index
    %c0_25 = arith.constant 0 : index
    %c1_26 = arith.constant 1 : index
    %c0_27 = arith.constant 0 : index
    %43 = vector.load %arg4[%c0_24, %c0_25, %c1_26, %c0_27] : memref<1x8x3x128xf32, #tpu.memory_space<vmem>>, vector<1x8x1x128xf32>
    %44 = vector.shape_cast %43 : vector<1x8x1x128xf32> to vector<8x128xf32>
    %45 = vector.shape_cast %42 : vector<8x128xf32> to vector<1x8x1x128xf32>
    tpu.vector_store %arg4[%c0_24, %c0_25, %c1_26, %c0_27], %45 {strides = array<i32>} : memref<1x8x3x128xf32, #tpu.memory_space<vmem>>, vector<1x8x1x128xf32>,
    %46 = arith.mulf %31, %9 : vector<8x128xf32>
    %cst_28 = arith.constant 8.000000e-01 : f32
    %47 = vector.broadcast %cst_28 : f32 to vector<8x128xf32>
    %48 = arith.mulf %47, %46 : vector<8x128xf32>
    %49 = arith.subf %6, %48 : vector<8x128xf32>
    %c0_29 = arith.constant 0 : index
    %c0_30 = arith.constant 0 : index
    %c2_31 = arith.constant 2 : index
    %c0_32 = arith.constant 0 : index
    %50 = vector.load %arg4[%c0_29, %c0_30, %c2_31, %c0_32] : memref<1x8x3x128xf32, #tpu.memory_space<vmem>>, vector<1x8x1x128xf32>
    %51 = vector.shape_cast %50 : vector<1x8x1x128xf32> to vector<8x128xf32>
    %52 = vector.shape_cast %49 : vector<8x128xf32> to vector<1x8x1x128xf32>
    tpu.vector_store %arg4[%c0_29, %c0_30, %c2_31, %c0_32], %52 {strides = array<i32>} : memref<1x8x3x128xf32, #tpu.memory_space<vmem>>, vector<1x8x1x128xf32>,
    return
  }
  func.func @transform_0(%arg0: i32, %arg1: i32) -> (i32, i32, i32, i32) {
    %c0_i32 = arith.constant 0 : i32
    %c0_i32_0 = arith.constant 0 : i32
    %c0_i32_1 = arith.constant 0 : i32
    return %arg0, %c0_i32, %c0_i32_0, %arg1 : i32, i32, i32, i32
  }
  func.func @transform_1(%arg0: i32, %arg1: i32) -> (i32, i32) {
    %c0_i32 = arith.constant 0 : i32
    %c0_i32_0 = arith.constant 0 : i32
    %c0_i32_1 = arith.constant 0 : i32
    return %c0_i32, %c0_i32_0 : i32, i32
  }
  func.func @transform_2(%arg0: i32, %arg1: i32) -> (i32, i32, i32, i32) {
    %c0_i32 = arith.constant 0 : i32
    %c0_i32_0 = arith.constant 0 : i32
    %c0_i32_1 = arith.constant 0 : i32
    return %arg0, %c0_i32, %c0_i32_0, %arg1 : i32, i32, i32, i32
  }
}

</mosaic_0001>

<llo_original>
// kernel: tpu_custom_call.1
$region0: #{tpu_custom_call.1}
  #allocation0 [shape = 'u32[]', space=smem, size = 0x4, offset = 0x4, fixed_abs, tag = 'smem constant byte address 0x4 - core index']
  #allocation1 [shape = 'u32[144,128]{1,0:T(1,128)}', space=vmem, size = 0x12000, scoped, tag = 'internal scratch']
  %s0 = inlined_call_operand.vmem [shape: f32[2,8,3,256], index: 0, kind: input, shape index: {}]
  %s1 = inlined_call_operand.vmem [shape: f32[8,8], index: 1, kind: input, shape index: {}]
  %s2 = inlined_call_operand.vmem [shape: f32[2,8,3,256], index: 2, kind: output, shape index: {}]
  %s3 = sld [smem:[#allocation0]]
  $region119: #{tpu_custom_call.1} parent=0
    _
  %s5 = ssub.s32 1, %s3
  %s6 = scalar_select 0, %s5, %s3
  $region1: #{tpu_custom_call.1} parent=0
    #allocation2 [shape = 'u8[32768]{0}', space=vmem, size = 0x8000, scoped, tag = 'input window, operand 0']
    #allocation3 [shape = 'u8[32768]{0}', space=vmem, size = 0x8000, scoped, tag = 'output window, operand 0']
    loop: start=0, step=1, limit=6
    $region2: #{tpu_custom_call.1} parent=1 // loop_pre_header
      _
    $region3: #{tpu_custom_call.1} parent=1 // loop_header
      %s8 = sphi 0, %s12
      %p9 = scmp.ge.s32.totalorder %s8, 6
      %s15 = sphi 0, %s27
      %s16 = sphi 0, %s23
      %s17 = sphi 0, %s15
      %s18 = sphi 0, %s16
      %s19 = sphi 0, %s17
      %s20 = sphi 0, %s18
      %s32 = sphi 0, %s34
      %s35 = sphi 0, %s32
      %s36 = sphi 0, %s35
      %s52 = sphi 0, %s36
      %s56 = sphi 0, %s56
      %s58 = sphi 0, %s56
      %s59 = sphi 0, %s58
      %s73 = sphi 0, %s59
      %s81 = sphi 0, %s83
      %s84 = sphi 0, %s81
      %s85 = sphi 0, %s84
      %s101 = sphi 0, %s85
    $region4: #{tpu_custom_call.1} parent=1 // loop_header_branch
      %11 = sbr.rel (%p9) target = $region8
    $region5: #{tpu_custom_call.1} parent=1 // loop_body
      %s13 = ssub.s32 %s8, 1
      %s14 = ssub.s32 %s8, 2
      %s21 = sadd.s32 1, %s16
      %p22 = scmp.ge.s32.totalorder %s21, 2
      %s23 = scalar_select %p22, 0, %s21
      %s24 = sadd.s32 1, %s15
      %s25 = scalar_select %p22, %s24, %s15
      %p26 = scmp.ge.s32.totalorder %s25, 2
      %s27 = scalar_select %p26, 0, %s25
      %s28 = ssub.s32 %s15, %s27
      %s29 = ssub.s32 %s16, %s23
      %s30 = sor.u32 %s28, %s29
      %p31 = scmp.eq.s32.totalorder %s30, 0
      %s33 = sadd.s32 %s32, 1
      %s34 = scalar_select %p31, %s32, %s33
      %p37 = pneg %p31
      %p38 = scmp.eq.s32.totalorder %s8, 3
      %p39 = por %p37, %p38
      %p40 = scmp.ne.s32.totalorder %s32, %s35
      %p41 = scmp.eq.s32.totalorder %s8, 0
      %p42 = por %p40, %p41
      %p43 = scmp.ne.s32.totalorder %s32, %s35
      %p44 = scmp.eq.s32.totalorder %s13, 3
      %p45 = por %p43, %p44
      %p46 = scmp.ne.s32.totalorder %s35, %s36
      %p47 = scmp.eq.s32.totalorder %s13, 0
      %p48 = por %p46, %p47
      %p49 = scmp.ne.s32.totalorder %s35, %s36
      %p50 = scmp.eq.s32.totalorder %s14, 3
      %p51 = por %p49, %p50
      %p53 = scmp.ne.s32.totalorder %s36, %s52
      %p54 = scmp.eq.s32.totalorder %s14, 0
      %p55 = por %p53, %p54
      %s57 = sadd.s32 %s56, 1
      %p60 = scmp.eq.s32.totalorder %s8, 3
      %p61 = scmp.ne.s32.totalorder %s56, %s58
      %p62 = scmp.eq.s32.totalorder %s8, 0
      %p63 = por %p61, %p62
      %p64 = scmp.ne.s32.totalorder %s56, %s58
      %p65 = scmp.eq.s32.totalorder %s13, 3
      %p66 = por %p64, %p65
      %p67 = scmp.ne.s32.totalorder %s58, %s59
      %p68 = scmp.eq.s32.totalorder %s13, 0
      %p69 = por %p67, %p68
      %p70 = scmp.ne.s32.totalorder %s58, %s59
      %p71 = scmp.eq.s32.totalorder %s14, 3
      %p72 = por %p70, %p71
      %p74 = scmp.ne.s32.totalorder %s59, %s73
      %p75 = scmp.eq.s32.totalorder %s14, 0
      %p76 = por %p74, %p75
      %s77 = ssub.s32 %s15, %s27
      %s78 = ssub.s32 %s16, %s23
      %s79 = sor.u32 %s77, %s78
      %p80 = scmp.eq.s32.totalorder %s79, 0
      %s82 = sadd.s32 %s81, 1
      %s83 = scalar_select %p80, %s81, %s82
      %p86 = pneg %p80
      %p87 = scmp.eq.s32.totalorder %s8, 3
      %p88 = por %p86, %p87
      %p89 = scmp.ne.s32.totalorder %s81, %s84
      %p90 = scmp.eq.s32.totalorder %s8, 0
      %p91 = por %p89, %p90
      %p92 = scmp.ne.s32.totalorder %s81, %s84
      %p93 = scmp.eq.s32.totalorder %s13, 3
      %p94 = por %p92, %p93
      %p95 = scmp.ne.s32.totalorder %s84, %s85
      %p96 = scmp.eq.s32.totalorder %s13, 0
      %p97 = por %p95, %p96
      %p98 = scmp.ne.s32.totalorder %s84, %s85
      %p99 = scmp.eq.s32.totalorder %s14, 3
      %p100 = por %p98, %p99
      %p102 = scmp.ne.s32.totalorder %s85, %s101
      %p103 = scmp.eq.s32.totalorder %s14, 0
      %p104 = por %p102, %p103
      %p105 = scmp.le.s32.totalorder 1, %s8
      %p106 = scmp.lt.s32.totalorder %s8, 5
      %p107 = pnand %p105, %p106
      %p108 = pneg %p107
      // Predicated region
      $region9: #{tpu_custom_call.1} parent=5 // pred_check
        _
      $region10: #{tpu_custom_call.1} parent=5 // pred_check_branch
        %110 = sbr.rel (%p107) target = $region12
      $region11: #{tpu_custom_call.1} parent=5 // pred_region
        %s111 = ssub.s32 %s8, 1
        // Predicated region
        $region13: #{tpu_custom_call.1} parent=11 // pred_check
          %p112 = pneg %p69
        $region14: #{tpu_custom_call.1} parent=11 // pred_check_branch
          %114 = sbr.rel (%p112) target = $region16
        $region15: #{tpu_custom_call.1} parent=11 // pred_region
          _
        $region16: #{tpu_custom_call.1} parent=11 // pred_fallthru
          _
      $region12: #{tpu_custom_call.1} parent=5 // pred_fallthru
        _
      %p115 = scmp.lt.s32.totalorder %s8, 4
      // Predicated region
      $region17: #{tpu_custom_call.1} parent=5 // pred_check
        %p116 = pneg %p115
      $region18: #{tpu_custom_call.1} parent=5 // pred_check_branch
        %118 = sbr.rel (%p116) target = $region20
      $region19: #{tpu_custom_call.1} parent=5 // pred_region
        // Predicated region
        $region21: #{tpu_custom_call.1} parent=19 // pred_check
          %p119 = pneg %p42
        $region22: #{tpu_custom_call.1} parent=19 // pred_check_branch
          %121 = sbr.rel (%p119) target = $region24
        $region23: #{tpu_custom_call.1} parent=19 // pred_region
          %s122 = sand.u32 %s32, 1
          %s123 = sand.u32 %s32, 1
          %s124 = smul.addr %s123, 32
          %s125 = scalar_lea.vmem [#allocation2], %s124
          %s126 = smul.addr %s15, 16
          %s127 = sadd.s32 %s16, %s126
          %s128 = smul.addr %s127, 4
          %s129 = scalar_lea.vmem %s0, %s128
          // Predicated region
          $region25: #{tpu_custom_call.1} parent=23 // pred_check
            _
          $region26: #{tpu_custom_call.1} parent=23 // pred_check_branch
            %131 = sbr.rel (0) target = $region28
          $region27: #{tpu_custom_call.1} parent=23 // pred_region
            // Predicated region
            $region29: #{tpu_custom_call.1} parent=27 // pred_check
              _
            $region30: #{tpu_custom_call.1} parent=27 // pred_check_branch
              %133 = sbr.rel target = $region32
            $region31: #{tpu_custom_call.1} parent=27 // pred_region
              // Predicated region
              $region44: #{tpu_custom_call.1} parent=31 // pred_check
                _
              $region45: #{tpu_custom_call.1} parent=31 // pred_check_branch
                %163 = sbr.rel (0) target = $region47
              $region46: #{tpu_custom_call.1} parent=31 // pred_region
                loop: start=0, step=1, limit=1
                $region48: #{tpu_custom_call.1} parent=46 // loop_pre_header
                  _
                $region49: #{tpu_custom_call.1} parent=46 // loop_header
                  %s165 = sphi 0, %s169
                  %p166 = scmp.ge.s32.totalorder %s165, 1
                  %s170 = sphi %s129, %s129
                  %s171 = sphi %s125, %s125
                $region50: #{tpu_custom_call.1} parent=46 // loop_header_branch
                  %168 = sbr.rel (%p166) target = $region54
                $region51: #{tpu_custom_call.1} parent=46 // loop_body
                  _
                $region52: #{tpu_custom_call.1} parent=46 // loop_footer
                  %s169 = sadd.s32 1, %s165
                $region53: #{tpu_custom_call.1} parent=46 // loop_footer_branch
                  %164 = sbr.rel target = $region49
                $region54: #{tpu_custom_call.1} parent=46 // loop_exit
                  _
                %s173 = ssub.s32 16, 1
                loop: start=0, step=1, limit=1
                $region55: #{tpu_custom_call.1} parent=46 // loop_pre_header
                  _
                $region56: #{tpu_custom_call.1} parent=46 // loop_header
                  %s175 = sphi 0, %s179
                  %p176 = scmp.ge.s32.totalorder %s175, 1
                  %s180 = sphi %s129, %s129
                  %s181 = sphi %s125, %s125
                $region57: #{tpu_custom_call.1} parent=46 // loop_header_branch
                  %178 = sbr.rel (%p176) target = $region61
                $region58: #{tpu_custom_call.1} parent=46 // loop_body
                  %v182 = vld [vmem:[%s180] sm:%s173]
                  %183 = vst [vmem:[%s181] sm:%s173] %v182
                  %v184 = vld [vmem:[%s180 + $0x8] sm:%s173]
                  %185 = vst [vmem:[%s181 + $0x4] sm:%s173] %v184
                  %v186 = vld [vmem:[%s180 + $0x10] sm:%s173]
                  %187 = vst [vmem:[%s181 + $0x8] sm:%s173] %v186
                  %v188 = vld [vmem:[%s180 + $0x18] sm:%s173]
                  %189 = vst [vmem:[%s181 + $0xc] sm:%s173] %v188
                  %v190 = vld [vmem:[%s180 + $0x20] sm:%s173]
                  %191 = vst [vmem:[%s181 + $0x10] sm:%s173] %v190
                  %v192 = vld [vmem:[%s180 + $0x28] sm:%s173]
                  %193 = vst [vmem:[%s181 + $0x14] sm:%s173] %v192
                  %v194 = vld [vmem:[%s180 + $0x30] sm:%s173]
                  %195 = vst [vmem:[%s181 + $0x18] sm:%s173] %v194
                  %v196 = vld [vmem:[%s180 + $0x38] sm:%s173]
                  %197 = vst [vmem:[%s181 + $0x1c] sm:%s173] %v196
                $region59: #{tpu_custom_call.1} parent=46 // loop_footer
                  %s179 = sadd.s32 1, %s175
                $region60: #{tpu_custom_call.1} parent=46 // loop_footer_branch
                  %174 = sbr.rel target = $region56
                $region61: #{tpu_custom_call.1} parent=46 // loop_exit
                  _
              $region47: #{tpu_custom_call.1} parent=31 // pred_fallthru
                _
            $region32: #{tpu_custom_call.1} parent=27 // pred_fallthru
              _
            // Predicated region
            $region33: #{tpu_custom_call.1} parent=27 // pred_check
              _
            $region34: #{tpu_custom_call.1} parent=27 // pred_check_branch
              %135 = sbr.rel (0) target = $region36
            $region35: #{tpu_custom_call.1} parent=27 // pred_region
              %s137 = ssub.s32 16, 1
              loop: start=0, step=1, limit=1
              $region37: #{tpu_custom_call.1} parent=35 // loop_pre_header
                _
              $region38: #{tpu_custom_call.1} parent=35 // loop_header
                %s139 = sphi 0, %s143
                %p140 = scmp.ge.s32.totalorder %s139, 1
                %s144 = sphi %s129, %s129
                %s145 = sphi %s125, %s125
              $region39: #{tpu_custom_call.1} parent=35 // loop_header_branch
                %142 = sbr.rel (%p140) target = $region43
              $region40: #{tpu_custom_call.1} parent=35 // loop_body
                %v146 = vld [vmem:[%s144] sm:%s137]
                %147 = vst [vmem:[%s145] sm:%s137] %v146
                %v148 = vld [vmem:[%s144 + $0x8] sm:%s137]
                %149 = vst [vmem:[%s145 + $0x4] sm:%s137] %v148
                %v150 = vld [vmem:[%s144 + $0x10] sm:%s137]
                %151 = vst [vmem:[%s145 + $0x8] sm:%s137] %v150
                %v152 = vld [vmem:[%s144 + $0x18] sm:%s137]
                %153 = vst [vmem:[%s145 + $0xc] sm:%s137] %v152
                %v154 = vld [vmem:[%s144 + $0x20] sm:%s137]
                %155 = vst [vmem:[%s145 + $0x10] sm:%s137] %v154
                %v156 = vld [vmem:[%s144 + $0x28] sm:%s137]
                %157 = vst [vmem:[%s145 + $0x14] sm:%s137] %v156
                %v158 = vld [vmem:[%s144 + $0x30] sm:%s137]
                %159 = vst [vmem:[%s145 + $0x18] sm:%s137] %v158
                %v160 = vld [vmem:[%s144 + $0x38] sm:%s137]
                %161 = vst [vmem:[%s145 + $0x1c] sm:%s137] %v160
              $region41: #{tpu_custom_call.1} parent=35 // loop_footer
                %s143 = sadd.s32 1, %s139
              $region42: #{tpu_custom_call.1} parent=35 // loop_footer_branch
                %138 = sbr.rel target = $region38
              $region43: #{tpu_custom_call.1} parent=35 // loop_exit
                _
            $region36: #{tpu_custom_call.1} parent=27 // pred_fallthru
              _
          $region28: #{tpu_custom_call.1} parent=23 // pred_fallthru
            _
          %198 = vnop
        $region24: #{tpu_custom_call.1} parent=19 // pred_fallthru
          _
      $region20: #{tpu_custom_call.1} parent=5 // pred_fallthru
        _
      %p199 = scmp.le.s32.totalorder 1, %s8
      %p200 = scmp.lt.s32.totalorder %s8, 5
      %p201 = pnand %p199, %p200
      %p202 = pneg %p201
      // Predicated region
      $region62: #{tpu_custom_call.1} parent=5 // pred_check
        _
      $region63: #{tpu_custom_call.1} parent=5 // pred_check_branch
        %204 = sbr.rel (%p201) target = $region65
      $region64: #{tpu_custom_call.1} parent=5 // pred_region
        %s205 = ssub.s32 %s8, 1
        %s206 = sand.u32 %s35, 1
        %s207 = sand.u32 %s35, 1
        %s208 = smul.addr %s207, 32
        %s209 = scalar_lea.vmem [#allocation2], %s208
        // Predicated region
        $region66: #{tpu_custom_call.1} parent=64 // pred_check
          %p210 = pneg %p48
        $region67: #{tpu_custom_call.1} parent=64 // pred_check_branch
          %212 = sbr.rel (%p210) target = $region69
        $region68: #{tpu_custom_call.1} parent=64 // pred_region
          _
        $region69: #{tpu_custom_call.1} parent=64 // pred_fallthru
          _
        %s213 = sand.u32 %s35, 1
        %s214 = sand.u32 %s35, 1
        %s215 = smul.addr %s214, 32
        %s216 = scalar_lea.vmem [#allocation2], %s215
        %p217 = pneg %p48
        %p218 = pneg %p45
        %p219 = pneg %p69
        %p220 = pneg %p66
        %p221 = pneg %p97
        %p222 = pneg %p94
        %s223 = sand.u32 %s84, 1
        %s224 = sand.u32 %s84, 1
        %s225 = smul.addr %s224, 32
        %s226 = scalar_lea.vmem [#allocation3], %s225
        %v227 = vld [vmem:[%s1] sm:$0xff]
        %v228 = vld [vmem:[%s209] sm:$0x1]
        %v229 = vld [vmem:[%s209 + $0x4] sm:$0x1]
        %v230 = vld [vmem:[%s209 + $0x8] sm:$0x1]
        %v231 = vld [vmem:[%s209 + $0xc] sm:$0x1]
        %v232 = vld [vmem:[%s209 + $0x10] sm:$0x1]
        %v233 = vld [vmem:[%s209 + $0x14] sm:$0x1]
        %v234 = vld [vmem:[%s209 + $0x18] sm:$0x1]
        %v235 = vld [vmem:[%s209 + $0x1c] sm:$0x1]
        %v236 = vld [vmem:[%s209 + $0x1] sm:$0x1]
        %v237 = vld [vmem:[%s209 + $0x5] sm:$0x1]
        %v238 = vld [vmem:[%s209 + $0x9] sm:$0x1]
        %v239 = vld [vmem:[%s209 + $0xd] sm:$0x1]
        %v240 = vld [vmem:[%s209 + $0x11] sm:$0x1]
        %v241 = vld [vmem:[%s209 + $0x15] sm:$0x1]
        %v242 = vld [vmem:[%s209 + $0x19] sm:$0x1]
        %v243 = vld [vmem:[%s209 + $0x1d] sm:$0x1]
        %v244 = vld [vmem:[%s209 + $0x2] sm:$0x1]
        %v245 = vld [vmem:[%s209 + $0x6] sm:$0x1]
        %v246 = vld [vmem:[%s209 + $0xa] sm:$0x1]
        %v247 = vld [vmem:[%s209 + $0xe] sm:$0x1]
        %v248 = vld [vmem:[%s209 + $0x12] sm:$0x1]
        %v249 = vld [vmem:[%s209 + $0x16] sm:$0x1]
        %v250 = vld [vmem:[%s209 + $0x1a] sm:$0x1]
        %v251 = vld [vmem:[%s209 + $0x1e] sm:$0x1]
        %v260 = vrot.slane %v229, 7
        %vm261 = vcmask 1041409
        %v262 = vsel %vm261, %v260, %v228
        %v263 = vrot.slane %v230, 6
        %vm264 = vcmask 1042434
        %v265 = vsel %vm264, %v263, %v262
        %v266 = vrot.slane %v231, 5
        %vm267 = vcmask 1043459
        %v268 = vsel %vm267, %v266, %v265
        %v269 = vrot.slane %v232, 4
        %vm270 = vcmask 1044484
        %v271 = vsel %vm270, %v269, %v268
        %v272 = vrot.slane %v233, 3
        %vm273 = vcmask 1045509
        %v274 = vsel %vm273, %v272, %v271
        %v275 = vrot.slane %v234, 2
        %vm276 = vcmask 1046534
        %v277 = vsel %vm276, %v275, %v274
        %v278 = vrot.slane %v235, 1
        %vm279 = vcmask 1047559
        %v280 = vsel %vm279, %v278, %v277
        %vm282 = vcmask 64512
        %v284 = vsel %vm282, %v227, 0
        %286 = vmatprep.subr.mxu0 0.0
        %287 = vmatpush1.msra.mxu0 0.0
        %288 = vmatprep.subr.mxu0 0.0
        %289 = vmatpush1.msra.mxu0 0.0
        %290 = vmatprep.subr.mxu0 0.0
        %291 = vmatpush1.msra.mxu0 0.0
        %292 = vmatprep.subr.mxu0 0.0
        %293 = vmatpush1.msra.mxu0 0.0
        %294 = vmatprep.subr.mxu0 0.0
        %295 = vmatpush1.msra.mxu0 0.0
        %296 = vmatprep.subr.mxu0 0.0
        %297 = vmatpush1.msra.mxu0 0.0
        %298 = vmatprep.subr.mxu0 0.0
        %299 = vmatpush1.msra.mxu0 0.0
        %300 = vmatprep.subr.mxu0 0.0
        %301 = vmatpush1.msra.mxu0 0.0
        %302 = vmatprep.subr.mxu0 0.0
        %303 = vmatpush1.msra.mxu0 0.0
        %304 = vmatprep.subr.mxu0 0.0
        %305 = vmatpush1.msra.mxu0 0.0
        %306 = vmatprep.subr.mxu0 0.0
        %307 = vmatpush1.msra.mxu0 0.0
        %308 = vmatprep.subr.mxu0 0.0
        %309 = vmatpush1.msra.mxu0 0.0
        %310 = vmatprep.subr.mxu0 0.0
        %311 = vmatpush1.msra.mxu0 0.0
        %312 = vmatprep.subr.mxu0 0.0
        %313 = vmatpush1.msra.mxu0 0.0
        %314 = vmatprep.subr.mxu0 0.0
        %315 = vmatpush1.msra.mxu0 0.0
        %316 = vmatprep.subr.mxu0 0.0
        %317 = vmatpush1.msra.mxu0 %v280
        %318 = vmatprep.subr.mxu0 0.0
        %319 = vmatpush2.msra.mxu0 0.0
        %320 = vmatprep.subr.mxu0 0.0
        %321 = vmatpush2.msra.mxu0 0.0
        %322 = vmatprep.subr.mxu0 0.0
        %323 = vmatpush2.msra.mxu0 0.0
        %324 = vmatprep.subr.mxu0 0.0
        %325 = vmatpush2.msra.mxu0 0.0
        %326 = vmatprep.subr.mxu0 0.0
        %327 = vmatpush2.msra.mxu0 0.0
        %328 = vmatprep.subr.mxu0 0.0
        %329 = vmatpush2.msra.mxu0 0.0
        %330 = vmatprep.subr.mxu0 0.0
        %331 = vmatpush2.msra.mxu0 0.0
        %332 = vmatprep.subr.mxu0 0.0
        %333 = vmatpush2.msra.mxu0 0.0
        %334 = vmatprep.subr.mxu0 0.0
        %335 = vmatpush2.msra.mxu0 0.0
        %336 = vmatprep.subr.mxu0 0.0
        %337 = vmatpush2.msra.mxu0 0.0
        %338 = vmatprep.subr.mxu0 0.0
        %339 = vmatpush2.msra.mxu0 0.0
        %340 = vmatprep.subr.mxu0 0.0
        %341 = vmatpush2.msra.mxu0 0.0
        %342 = vmatprep.subr.mxu0 0.0
        %343 = vmatpush2.msra.mxu0 0.0
        %344 = vmatprep.subr.mxu0 0.0
        %345 = vmatpush2.msra.mxu0 0.0
        %346 = vmatprep.subr.mxu0 0.0
        %347 = vmatpush2.msra.mxu0 0.0
        %348 = vmatprep.subr.mxu0 0.0
        %349 = vmatpush2.msra.mxu0 0.0
        %350 = vmatprep.mubr.f32.mxu0 0.0
        %351 = vmatmul.mubr.f32.gmra.mxu0 %v284
        %v352 = vpop.f32.mrf.mxu0
        %v353 = vadd.f32 0.0, %v352
        %v354 = vpop.f32.mrf.mxu0
        %355 = vdwg.mxu0
        %v364 = vrot.slane %v237, 7
        %v365 = vsel %vm261, %v364, %v236
        %v366 = vrot.slane %v238, 6
        %v367 = vsel %vm264, %v366, %v365
        %v368 = vrot.slane %v239, 5
        %v369 = vsel %vm267, %v368, %v367
        %v370 = vrot.slane %v240, 4
        %v371 = vsel %vm270, %v370, %v369
        %v372 = vrot.slane %v241, 3
        %v373 = vsel %vm273, %v372, %v371
        %v374 = vrot.slane %v242, 2
        %v375 = vsel %vm276, %v374, %v373
        %v376 = vrot.slane %v243, 1
        %v377 = vsel %vm279, %v376, %v375
        %379 = vmatprep.subr.mxu0 0.0
        %380 = vmatpush1.msra.mxu0 0.0
        %381 = vmatprep.subr.mxu0 0.0
        %382 = vmatpush1.msra.mxu0 0.0
        %383 = vmatprep.subr.mxu0 0.0
        %384 = vmatpush1.msra.mxu0 0.0
        %385 = vmatprep.subr.mxu0 0.0
        %386 = vmatpush1.msra.mxu0 0.0
        %387 = vmatprep.subr.mxu0 0.0
        %388 = vmatpush1.msra.mxu0 0.0
        %389 = vmatprep.subr.mxu0 0.0
        %390 = vmatpush1.msra.mxu0 0.0
        %391 = vmatprep.subr.mxu0 0.0
        %392 = vmatpush1.msra.mxu0 0.0
        %393 = vmatprep.subr.mxu0 0.0
        %394 = vmatpush1.msra.mxu0 0.0
        %395 = vmatprep.subr.mxu0 0.0
        %396 = vmatpush1.msra.mxu0 0.0
        %397 = vmatprep.subr.mxu0 0.0
        %398 = vmatpush1.msra.mxu0 0.0
        %399 = vmatprep.subr.mxu0 0.0
        %400 = vmatpush1.msra.mxu0 0.0
        %401 = vmatprep.subr.mxu0 0.0
        %402 = vmatpush1.msra.mxu0 0.0
        %403 = vmatprep.subr.mxu0 0.0
        %404 = vmatpush1.msra.mxu0 0.0
        %405 = vmatprep.subr.mxu0 0.0
        %406 = vmatpush1.msra.mxu0 0.0
        %407 = vmatprep.subr.mxu0 0.0
        %408 = vmatpush1.msra.mxu0 0.0
        %409 = vmatprep.subr.mxu0 0.0
        %410 = vmatpush1.msra.mxu0 %v377
        %411 = vmatprep.subr.mxu0 0.0
        %412 = vmatpush2.msra.mxu0 0.0
        %413 = vmatprep.subr.mxu0 0.0
        %414 = vmatpush2.msra.mxu0 0.0
        %415 = vmatprep.subr.mxu0 0.0
        %416 = vmatpush2.msra.mxu0 0.0
        %417 = vmatprep.subr.mxu0 0.0
        %418 = vmatpush2.msra.mxu0 0.0
        %419 = vmatprep.subr.mxu0 0.0
        %420 = vmatpush2.msra.mxu0 0.0
        %421 = vmatprep.subr.mxu0 0.0
        %422 = vmatpush2.msra.mxu0 0.0
        %423 = vmatprep.subr.mxu0 0.0
        %424 = vmatpush2.msra.mxu0 0.0
        %425 = vmatprep.subr.mxu0 0.0
        %426 = vmatpush2.msra.mxu0 0.0
        %427 = vmatprep.subr.mxu0 0.0
        %428 = vmatpush2.msra.mxu0 0.0
        %429 = vmatprep.subr.mxu0 0.0
        %430 = vmatpush2.msra.mxu0 0.0
        %431 = vmatprep.subr.mxu0 0.0
        %432 = vmatpush2.msra.mxu0 0.0
        %433 = vmatprep.subr.mxu0 0.0
        %434 = vmatpush2.msra.mxu0 0.0
        %435 = vmatprep.subr.mxu0 0.0
        %436 = vmatpush2.msra.mxu0 0.0
        %437 = vmatprep.subr.mxu0 0.0
        %438 = vmatpush2.msra.mxu0 0.0
        %439 = vmatprep.subr.mxu0 0.0
        %440 = vmatpush2.msra.mxu0 0.0
        %441 = vmatprep.subr.mxu0 0.0
        %442 = vmatpush2.msra.mxu0 0.0
        %443 = vmatprep.mubr.f32.mxu0 0.0
        %444 = vmatmul.mubr.f32.gmra.mxu0 %v284
        %v445 = vpop.f32.mrf.mxu0
        %v446 = vadd.f32 0.0, %v445
        %v447 = vpop.f32.mrf.mxu0
        %448 = vdwg.mxu0
        %v457 = vrot.slane %v245, 7
        %v458 = vsel %vm261, %v457, %v244
        %v459 = vrot.slane %v246, 6
        %v460 = vsel %vm264, %v459, %v458
        %v461 = vrot.slane %v247, 5
        %v462 = vsel %vm267, %v461, %v460
        %v463 = vrot.slane %v248, 4
        %v464 = vsel %vm270, %v463, %v462
        %v465 = vrot.slane %v249, 3
        %v466 = vsel %vm273, %v465, %v464
        %v467 = vrot.slane %v250, 2
        %v468 = vsel %vm276, %v467, %v466
        %v469 = vrot.slane %v251, 1
        %v470 = vsel %vm279, %v469, %v468
        %472 = vmatprep.subr.mxu0 0.0
        %473 = vmatpush1.msra.mxu0 0.0
        %474 = vmatprep.subr.mxu0 0.0
        %475 = vmatpush1.msra.mxu0 0.0
        %476 = vmatprep.subr.mxu0 0.0
        %477 = vmatpush1.msra.mxu0 0.0
        %478 = vmatprep.subr.mxu0 0.0
        %479 = vmatpush1.msra.mxu0 0.0
        %480 = vmatprep.subr.mxu0 0.0
        %481 = vmatpush1.msra.mxu0 0.0
        %482 = vmatprep.subr.mxu0 0.0
        %483 = vmatpush1.msra.mxu0 0.0
        %484 = vmatprep.subr.mxu0 0.0
        %485 = vmatpush1.msra.mxu0 0.0
        %486 = vmatprep.subr.mxu0 0.0
        %487 = vmatpush1.msra.mxu0 0.0
        %488 = vmatprep.subr.mxu0 0.0
        %489 = vmatpush1.msra.mxu0 0.0
        %490 = vmatprep.subr.mxu0 0.0
        %491 = vmatpush1.msra.mxu0 0.0
        %492 = vmatprep.subr.mxu0 0.0
        %493 = vmatpush1.msra.mxu0 0.0
        %494 = vmatprep.subr.mxu0 0.0
        %495 = vmatpush1.msra.mxu0 0.0
        %496 = vmatprep.subr.mxu0 0.0
        %497 = vmatpush1.msra.mxu0 0.0
        %498 = vmatprep.subr.mxu0 0.0
        %499 = vmatpush1.msra.mxu0 0.0
        %500 = vmatprep.subr.mxu0 0.0
        %501 = vmatpush1.msra.mxu0 0.0
        %502 = vmatprep.subr.mxu0 0.0
        %503 = vmatpush1.msra.mxu0 %v470
        %504 = vmatprep.subr.mxu0 0.0
        %505 = vmatpush2.msra.mxu0 0.0
        %506 = vmatprep.subr.mxu0 0.0
        %507 = vmatpush2.msra.mxu0 0.0
        %508 = vmatprep.subr.mxu0 0.0
        %509 = vmatpush2.msra.mxu0 0.0
        %510 = vmatprep.subr.mxu0 0.0
        %511 = vmatpush2.msra.mxu0 0.0
        %512 = vmatprep.subr.mxu0 0.0
        %513 = vmatpush2.msra.mxu0 0.0
        %514 = vmatprep.subr.mxu0 0.0
        %515 = vmatpush2.msra.mxu0 0.0
        %516 = vmatprep.subr.mxu0 0.0
        %517 = vmatpush2.msra.mxu0 0.0
        %518 = vmatprep.subr.mxu0 0.0
        %519 = vmatpush2.msra.mxu0 0.0
        %520 = vmatprep.subr.mxu0 0.0
        %521 = vmatpush2.msra.mxu0 0.0
        %522 = vmatprep.subr.mxu0 0.0
        %523 = vmatpush2.msra.mxu0 0.0
        %524 = vmatprep.subr.mxu0 0.0
        %525 = vmatpush2.msra.mxu0 0.0
        %526 = vmatprep.subr.mxu0 0.0
        %527 = vmatpush2.msra.mxu0 0.0
        %528 = vmatprep.subr.mxu0 0.0
        %529 = vmatpush2.msra.mxu0 0.0
        %530 = vmatprep.subr.mxu0 0.0
        %531 = vmatpush2.msra.mxu0 0.0
        %532 = vmatprep.subr.mxu0 0.0
        %533 = vmatpush2.msra.mxu0 0.0
        %534 = vmatprep.subr.mxu0 0.0
        %535 = vmatpush2.msra.mxu0 0.0
        %536 = vmatprep.mubr.f32.mxu0 0.0
        %537 = vmatmul.mubr.f32.gmra.mxu0 %v284
        %v538 = vpop.f32.mrf.mxu0
        %v539 = vadd.f32 0.0, %v538
        %v540 = vpop.f32.mrf.mxu0
        %541 = vdwg.mxu0
        %v543 = vrot.slane %v353, 1
        %v544 = vrot.slane %v353, 2
        %v545 = vrot.slane %v353, 3
        %v546 = vrot.slane %v353, 4
        %v547 = vrot.slane %v353, 5
        %v548 = vrot.slane %v353, 6
        %v549 = vrot.slane %v353, 7
        %v558 = vmul.f32 %v228, %v353
        %v559 = vmul.f32 %v229, %v543
        %v560 = vmul.f32 %v230, %v544
        %v561 = vmul.f32 %v231, %v545
        %v562 = vmul.f32 %v232, %v546
        %v563 = vmul.f32 %v233, %v547
        %v564 = vmul.f32 %v234, %v548
        %v565 = vmul.f32 %v235, %v549
        %v566 = vadd.f32 %v558, 0.0
        %v567 = vadd.f32 %v559, 0.0
        %v568 = vadd.f32 %v560, 0.0
        %v569 = vadd.f32 %v561, 0.0
        %v570 = vadd.f32 %v562, 0.0
        %v571 = vadd.f32 %v563, 0.0
        %v572 = vadd.f32 %v564, 0.0
        %v573 = vadd.f32 %v565, 0.0
        %v575 = vrot.slane %v446, 1
        %v576 = vrot.slane %v446, 2
        %v577 = vrot.slane %v446, 3
        %v578 = vrot.slane %v446, 4
        %v579 = vrot.slane %v446, 5
        %v580 = vrot.slane %v446, 6
        %v581 = vrot.slane %v446, 7
        %v590 = vmul.f32 %v236, %v446
        %v591 = vmul.f32 %v237, %v575
        %v592 = vmul.f32 %v238, %v576
        %v593 = vmul.f32 %v239, %v577
        %v594 = vmul.f32 %v240, %v578
        %v595 = vmul.f32 %v241, %v579
        %v596 = vmul.f32 %v242, %v580
        %v597 = vmul.f32 %v243, %v581
        %v598 = vadd.f32 %v566, %v590
        %v599 = vadd.f32 %v567, %v591
        %v600 = vadd.f32 %v568, %v592
        %v601 = vadd.f32 %v569, %v593
        %v602 = vadd.f32 %v570, %v594
        %v603 = vadd.f32 %v571, %v595
        %v604 = vadd.f32 %v572, %v596
        %v605 = vadd.f32 %v573, %v597
        %v607 = vrot.slane %v539, 1
        %v608 = vrot.slane %v539, 2
        %v609 = vrot.slane %v539, 3
        %v610 = vrot.slane %v539, 4
        %v611 = vrot.slane %v539, 5
        %v612 = vrot.slane %v539, 6
        %v613 = vrot.slane %v539, 7
        %v622 = vmul.f32 %v244, %v539
        %v623 = vmul.f32 %v245, %v607
        %v624 = vmul.f32 %v246, %v608
        %v625 = vmul.f32 %v247, %v609
        %v626 = vmul.f32 %v248, %v610
        %v627 = vmul.f32 %v249, %v611
        %v628 = vmul.f32 %v250, %v612
        %v629 = vmul.f32 %v251, %v613
        %v630 = vadd.f32 %v598, %v622
        %v631 = vadd.f32 %v599, %v623
        %v632 = vadd.f32 %v600, %v624
        %v633 = vadd.f32 %v601, %v625
        %v634 = vadd.f32 %v602, %v626
        %v635 = vadd.f32 %v603, %v627
        %v636 = vadd.f32 %v604, %v628
        %v637 = vadd.f32 %v605, %v629
        %v638 = vmul.f32 %v353, %v353
        %v639 = vadd.f32 %v638, 0.0
        %v640 = vmul.f32 %v446, %v446
        %v641 = vadd.f32 %v639, %v640
        %v642 = vmul.f32 %v539, %v539
        %v643 = vadd.f32 %v641, %v642
        %v644 = vadd.f32 %v643, 1e-06
        %v645 = vrcp.pop %v644
        %vm646 = vcmp.ge.f32.partialorder %v630, 0.0
        %vm647 = vcmp.ge.f32.partialorder %v631, 0.0
        %vm648 = vcmp.ge.f32.partialorder %v632, 0.0
        %vm649 = vcmp.ge.f32.partialorder %v633, 0.0
        %vm650 = vcmp.ge.f32.partialorder %v634, 0.0
        %vm651 = vcmp.ge.f32.partialorder %v635, 0.0
        %vm652 = vcmp.ge.f32.partialorder %v636, 0.0
        %vm653 = vcmp.ge.f32.partialorder %v637, 0.0
        %v655 = vrot.slane %v645, 1
        %v656 = vrot.slane %v645, 2
        %v657 = vrot.slane %v645, 3
        %v658 = vrot.slane %v645, 4
        %v659 = vrot.slane %v645, 5
        %v660 = vrot.slane %v645, 6
        %v661 = vrot.slane %v645, 7
        %v670 = vmul.f32 %v630, %v645
        %v671 = vmul.f32 %v631, %v655
        %v672 = vmul.f32 %v632, %v656
        %v673 = vmul.f32 %v633, %v657
        %v674 = vmul.f32 %v634, %v658
        %v675 = vmul.f32 %v635, %v659
        %v676 = vmul.f32 %v636, %v660
        %v677 = vmul.f32 %v637, %v661
        %v678 = vsel %vm646, 0.0, %v670
        %v679 = vsel %vm647, 0.0, %v671
        %v680 = vsel %vm648, 0.0, %v672
        %v681 = vsel %vm649, 0.0, %v673
        %v682 = vsel %vm650, 0.0, %v674
        %v683 = vsel %vm651, 0.0, %v675
        %v684 = vsel %vm652, 0.0, %v676
        %v685 = vsel %vm653, 0.0, %v677
        %v686 = vmul.f32 %v678, %v353
        %v687 = vmul.f32 %v679, %v543
        %v688 = vmul.f32 %v680, %v544
        %v689 = vmul.f32 %v681, %v545
        %v690 = vmul.f32 %v682, %v546
        %v691 = vmul.f32 %v683, %v547
        %v692 = vmul.f32 %v684, %v548
        %v693 = vmul.f32 %v685, %v549
        %v694 = vmul.f32 %v686, 0.8
        %v695 = vmul.f32 %v687, 0.8
        %v696 = vmul.f32 %v688, 0.8
        %v697 = vmul.f32 %v689, 0.8
        %v698 = vmul.f32 %v690, 0.8
        %v699 = vmul.f32 %v691, 0.8
        %v700 = vmul.f32 %v692, 0.8
        %v701 = vmul.f32 %v693, 0.8
        %v702 = vsub.f32 %v228, %v694
        %v703 = vsub.f32 %v229, %v695
        %v704 = vsub.f32 %v230, %v696
        %v705 = vsub.f32 %v231, %v697
        %v706 = vsub.f32 %v232, %v698
        %v707 = vsub.f32 %v233, %v699
        %v708 = vsub.f32 %v234, %v700
        %v709 = vsub.f32 %v235, %v701
        %710 = vst [vmem:[%s226] sm:$0x1] %v702
        %711 = vst [vmem:[%s226 + $0x4] sm:$0x1] %v703
        %712 = vst [vmem:[%s226 + $0x8] sm:$0x1] %v704
        %713 = vst [vmem:[%s226 + $0xc] sm:$0x1] %v705
        %714 = vst [vmem:[%s226 + $0x10] sm:$0x1] %v706
        %715 = vst [vmem:[%s226 + $0x14] sm:$0x1] %v707
        %716 = vst [vmem:[%s226 + $0x18] sm:$0x1] %v708
        %717 = vst [vmem:[%s226 + $0x1c] sm:$0x1] %v709
        %v718 = vmul.f32 %v678, %v446
        %v719 = vmul.f32 %v679, %v575
        %v720 = vmul.f32 %v680, %v576
        %v721 = vmul.f32 %v681, %v577
        %v722 = vmul.f32 %v682, %v578
        %v723 = vmul.f32 %v683, %v579
        %v724 = vmul.f32 %v684, %v580
        %v725 = vmul.f32 %v685, %v581
        %v726 = vmul.f32 %v718, 0.8
        %v727 = vmul.f32 %v719, 0.8
        %v728 = vmul.f32 %v720, 0.8
        %v729 = vmul.f32 %v721, 0.8
        %v730 = vmul.f32 %v722, 0.8
        %v731 = vmul.f32 %v723, 0.8
        %v732 = vmul.f32 %v724, 0.8
        %v733 = vmul.f32 %v725, 0.8
        %v734 = vsub.f32 %v236, %v726
        %v735 = vsub.f32 %v237, %v727
        %v736 = vsub.f32 %v238, %v728
        %v737 = vsub.f32 %v239, %v729
        %v738 = vsub.f32 %v240, %v730
        %v739 = vsub.f32 %v241, %v731
        %v740 = vsub.f32 %v242, %v732
        %v741 = vsub.f32 %v243, %v733
        %742 = vst [vmem:[%s226 + $0x1] sm:$0x1] %v734
        %743 = vst [vmem:[%s226 + $0x5] sm:$0x1] %v735
        %744 = vst [vmem:[%s226 + $0x9] sm:$0x1] %v736
        %745 = vst [vmem:[%s226 + $0xd] sm:$0x1] %v737
        %746 = vst [vmem:[%s226 + $0x11] sm:$0x1] %v738
        %747 = vst [vmem:[%s226 + $0x15] sm:$0x1] %v739
        %748 = vst [vmem:[%s226 + $0x19] sm:$0x1] %v740
        %749 = vst [vmem:[%s226 + $0x1d] sm:$0x1] %v741
        %v750 = vmul.f32 %v678, %v539
        %v751 = vmul.f32 %v679, %v607
        %v752 = vmul.f32 %v680, %v608
        %v753 = vmul.f32 %v681, %v609
        %v754 = vmul.f32 %v682, %v610
        %v755 = vmul.f32 %v683, %v611
        %v756 = vmul.f32 %v684, %v612
        %v757 = vmul.f32 %v685, %v613
        %v758 = vmul.f32 %v750, 0.8
        %v759 = vmul.f32 %v751, 0.8
        %v760 = vmul.f32 %v752, 0.8
        %v761 = vmul.f32 %v753, 0.8
        %v762 = vmul.f32 %v754, 0.8
        %v763 = vmul.f32 %v755, 0.8
        %v764 = vmul.f32 %v756, 0.8
        %v765 = vmul.f32 %v757, 0.8
        %v766 = vsub.f32 %v244, %v758
        %v767 = vsub.f32 %v245, %v759
        %v768 = vsub.f32 %v246, %v760
        %v769 = vsub.f32 %v247, %v761
        %v770 = vsub.f32 %v248, %v762
        %v771 = vsub.f32 %v249, %v763
        %v772 = vsub.f32 %v250, %v764
        %v773 = vsub.f32 %v251, %v765
        %774 = vst [vmem:[%s226 + $0x2] sm:$0x1] %v766
        %775 = vst [vmem:[%s226 + $0x6] sm:$0x1] %v767
        %776 = vst [vmem:[%s226 + $0xa] sm:$0x1] %v768
        %777 = vst [vmem:[%s226 + $0xe] sm:$0x1] %v769
        %778 = vst [vmem:[%s226 + $0x12] sm:$0x1] %v770
        %779 = vst [vmem:[%s226 + $0x16] sm:$0x1] %v771
        %780 = vst [vmem:[%s226 + $0x1a] sm:$0x1] %v772
        %781 = vst [vmem:[%s226 + $0x1e] sm:$0x1] %v773
        %s782 = sand.u32 %s84, 1
        %s783 = sand.u32 %s84, 1
        %s784 = smul.addr %s783, 32
        %s785 = scalar_lea.vmem [#allocation3], %s784
        // Predicated region
        $region70: #{tpu_custom_call.1} parent=64 // pred_check
          %p786 = pneg %p94
        $region71: #{tpu_custom_call.1} parent=64 // pred_check_branch
          %788 = sbr.rel (%p786) target = $region73
        $region72: #{tpu_custom_call.1} parent=64 // pred_region
          %s789 = smul.addr %s17, 16
          %s790 = sadd.s32 %s18, %s789
          %s791 = smul.addr %s790, 4
          %s792 = scalar_lea.vmem %s2, %s791
          // Predicated region
          $region74: #{tpu_custom_call.1} parent=72 // pred_check
            _
          $region75: #{tpu_custom_call.1} parent=72 // pred_check_branch
            %794 = sbr.rel (0) target = $region77
          $region76: #{tpu_custom_call.1} parent=72 // pred_region
            // Predicated region
            $region78: #{tpu_custom_call.1} parent=76 // pred_check
              _
            $region79: #{tpu_custom_call.1} parent=76 // pred_check_branch
              %796 = sbr.rel target = $region81
            $region80: #{tpu_custom_call.1} parent=76 // pred_region
              // Predicated region
              $region93: #{tpu_custom_call.1} parent=80 // pred_check
                _
              $region94: #{tpu_custom_call.1} parent=80 // pred_check_branch
                %826 = sbr.rel (0) target = $region96
              $region95: #{tpu_custom_call.1} parent=80 // pred_region
                loop: start=0, step=1, limit=1
                $region97: #{tpu_custom_call.1} parent=95 // loop_pre_header
                  _
                $region98: #{tpu_custom_call.1} parent=95 // loop_header
                  %s828 = sphi 0, %s832
                  %p829 = scmp.ge.s32.totalorder %s828, 1
                  %s833 = sphi %s785, %s785
                  %s834 = sphi %s792, %s792
                $region99: #{tpu_custom_call.1} parent=95 // loop_header_branch
                  %831 = sbr.rel (%p829) target = $region103
                $region100: #{tpu_custom_call.1} parent=95 // loop_body
                  _
                $region101: #{tpu_custom_call.1} parent=95 // loop_footer
                  %s832 = sadd.s32 1, %s828
                $region102: #{tpu_custom_call.1} parent=95 // loop_footer_branch
                  %827 = sbr.rel target = $region98
                $region103: #{tpu_custom_call.1} parent=95 // loop_exit
                  _
                %s836 = ssub.s32 16, 1
                loop: start=0, step=1, limit=1
                $region104: #{tpu_custom_call.1} parent=95 // loop_pre_header
                  _
                $region105: #{tpu_custom_call.1} parent=95 // loop_header
                  %s838 = sphi 0, %s842
                  %p839 = scmp.ge.s32.totalorder %s838, 1
                  %s843 = sphi %s785, %s785
                  %s844 = sphi %s792, %s792
                $region106: #{tpu_custom_call.1} parent=95 // loop_header_branch
                  %841 = sbr.rel (%p839) target = $region110
                $region107: #{tpu_custom_call.1} parent=95 // loop_body
                  %v845 = vld [vmem:[%s843] sm:%s836]
                  %846 = vst [vmem:[%s844] sm:%s836] %v845
                  %v847 = vld [vmem:[%s843 + $0x4] sm:%s836]
                  %848 = vst [vmem:[%s844 + $0x8] sm:%s836] %v847
                  %v849 = vld [vmem:[%s843 + $0x8] sm:%s836]
                  %850 = vst [vmem:[%s844 + $0x10] sm:%s836] %v849
                  %v851 = vld [vmem:[%s843 + $0xc] sm:%s836]
                  %852 = vst [vmem:[%s844 + $0x18] sm:%s836] %v851
                  %v853 = vld [vmem:[%s843 + $0x10] sm:%s836]
                  %854 = vst [vmem:[%s844 + $0x20] sm:%s836] %v853
                  %v855 = vld [vmem:[%s843 + $0x14] sm:%s836]
                  %856 = vst [vmem:[%s844 + $0x28] sm:%s836] %v855
                  %v857 = vld [vmem:[%s843 + $0x18] sm:%s836]
                  %858 = vst [vmem:[%s844 + $0x30] sm:%s836] %v857
                  %v859 = vld [vmem:[%s843 + $0x1c] sm:%s836]
                  %860 = vst [vmem:[%s844 + $0x38] sm:%s836] %v859
                $region108: #{tpu_custom_call.1} parent=95 // loop_footer
                  %s842 = sadd.s32 1, %s838
                $region109: #{tpu_custom_call.1} parent=95 // loop_footer_branch
                  %837 = sbr.rel target = $region105
                $region110: #{tpu_custom_call.1} parent=95 // loop_exit
                  _
              $region96: #{tpu_custom_call.1} parent=80 // pred_fallthru
                _
            $region81: #{tpu_custom_call.1} parent=76 // pred_fallthru
              _
            // Predicated region
            $region82: #{tpu_custom_call.1} parent=76 // pred_check
              _
            $region83: #{tpu_custom_call.1} parent=76 // pred_check_branch
              %798 = sbr.rel (0) target = $region85
            $region84: #{tpu_custom_call.1} parent=76 // pred_region
              %s800 = ssub.s32 16, 1
              loop: start=0, step=1, limit=1
              $region86: #{tpu_custom_call.1} parent=84 // loop_pre_header
                _
              $region87: #{tpu_custom_call.1} parent=84 // loop_header
                %s802 = sphi 0, %s806
                %p803 = scmp.ge.s32.totalorder %s802, 1
                %s807 = sphi %s785, %s785
                %s808 = sphi %s792, %s792
              $region88: #{tpu_custom_call.1} parent=84 // loop_header_branch
                %805 = sbr.rel (%p803) target = $region92
              $region89: #{tpu_custom_call.1} parent=84 // loop_body
                %v809 = vld [vmem:[%s807] sm:%s800]
                %810 = vst [vmem:[%s808] sm:%s800] %v809
                %v811 = vld [vmem:[%s807 + $0x4] sm:%s800]
                %812 = vst [vmem:[%s808 + $0x8] sm:%s800] %v811
                %v813 = vld [vmem:[%s807 + $0x8] sm:%s800]
                %814 = vst [vmem:[%s808 + $0x10] sm:%s800] %v813
                %v815 = vld [vmem:[%s807 + $0xc] sm:%s800]
                %816 = vst [vmem:[%s808 + $0x18] sm:%s800] %v815
                %v817 = vld [vmem:[%s807 + $0x10] sm:%s800]
                %818 = vst [vmem:[%s808 + $0x20] sm:%s800] %v817
                %v819 = vld [vmem:[%s807 + $0x14] sm:%s800]
                %820 = vst [vmem:[%s808 + $0x28] sm:%s800] %v819
                %v821 = vld [vmem:[%s807 + $0x18] sm:%s800]
                %822 = vst [vmem:[%s808 + $0x30] sm:%s800] %v821
                %v823 = vld [vmem:[%s807 + $0x1c] sm:%s800]
                %824 = vst [vmem:[%s808 + $0x38] sm:%s800] %v823
              $region90: #{tpu_custom_call.1} parent=84 // loop_footer
                %s806 = sadd.s32 1, %s802
              $region91: #{tpu_custom_call.1} parent=84 // loop_footer_branch
                %801 = sbr.rel target = $region87
              $region92: #{tpu_custom_call.1} parent=84 // loop_exit
                _
            $region85: #{tpu_custom_call.1} parent=76 // pred_fallthru
              _
          $region77: #{tpu_custom_call.1} parent=72 // pred_fallthru
            _
          %861 = vnop
        $region73: #{tpu_custom_call.1} parent=64 // pred_fallthru
          _
      $region65: #{tpu_custom_call.1} parent=5 // pred_fallthru
        _
      %p862 = scmp.le.s32.totalorder 2, %s8
      // Predicated region
      $region111: #{tpu_custom_call.1} parent=5 // pred_check
        %p863 = pneg %p862
      $region112: #{tpu_custom_call.1} parent=5 // pred_check_branch
        %865 = sbr.rel (%p863) target = $region114
      $region113: #{tpu_custom_call.1} parent=5 // pred_region
        %s866 = ssub.s32 %s8, 2
        // Predicated region
        $region115: #{tpu_custom_call.1} parent=113 // pred_check
          %p867 = pneg %p100
        $region116: #{tpu_custom_call.1} parent=113 // pred_check_branch
          %869 = sbr.rel (%p867) target = $region118
        $region117: #{tpu_custom_call.1} parent=113 // pred_region
          %s870 = sand.u32 %s85, 1
          %s871 = sand.u32 %s85, 1
          %s872 = smul.addr %s871, 32
          %s873 = scalar_lea.vmem [#allocation3], %s872
        $region118: #{tpu_custom_call.1} parent=113 // pred_fallthru
          _
      $region114: #{tpu_custom_call.1} parent=5 // pred_fallthru
        _
    $region6: #{tpu_custom_call.1} parent=1 // loop_footer
      %s12 = sadd.s32 1, %s8
    $region7: #{tpu_custom_call.1} parent=1 // loop_footer_branch
      %7 = sbr.rel target = $region3
    $region8: #{tpu_custom_call.1} parent=1 // loop_exit
      _

</llo_original>
